<compile_context>
chip_gen: v6e
topology: v6e:2x2x1
jax: 0.10.0
libtpu: 0.0.40
codegen_flags: <defaults>
</compile_context>

<pallas_src>
import functools

import jax
import jax.numpy as jnp
from jax.experimental import pallas as pl
from jax.experimental.pallas import tpu as pltpu

_LANE = 128  # lane width / MXU column alignment for the hidden dim


def _round_up(x: int, m: int) -> int:
    return ((x + m - 1) // m) * m


def _cdiv(a: int, b: int) -> int:
    return (a + b - 1) // b


# --------------------------------------------------------------------------
# Kernel body: fused fc1 -> ReLU -> fc2 -> ReLU -> fc3 for one batch tile.
# h1 / h2 never touch HBM; all matmuls accumulate in f32 on the MXU.
# --------------------------------------------------------------------------
def _mlp_kernel(x_ref, w1_ref, b1_ref, w2_ref, b2_ref, w3_ref, b3_ref, o_ref):
    # Cast X to the weight dtype in-register (keeps MXU on its fast bf16 path
    # when weights are bf16; no-op for f32 weights). X stays f32 in HBM.
    x = x_ref[...].astype(w1_ref.dtype)

    h1 = jnp.dot(x, w1_ref[...], preferred_element_type=jnp.float32)
    h1 = jnp.maximum(h1 + b1_ref[...], 0.0)

    h1 = h1.astype(w2_ref.dtype)
    h2 = jnp.dot(h1, w2_ref[...], preferred_element_type=jnp.float32)
    h2 = jnp.maximum(h2 + b2_ref[...], 0.0)

    h2 = h2.astype(w3_ref.dtype)
    out = jnp.dot(h2, w3_ref[...], preferred_element_type=jnp.float32)
    o_ref[...] = (out + b3_ref[...]).astype(o_ref.dtype)


# --------------------------------------------------------------------------
# One-time parameter preparation (review: hoist per-call pad/cast out of jit).
# --------------------------------------------------------------------------
def prepare_params(w1, b1, w2, b2, w3, b3, compute_dtype="auto"):
    """Pad the hidden dim to a multiple of 128 and cast weights ONCE.

    wK: (in_features, out_features)  -- already transposed vs. torch's (out,in)
    bK: (out_features,) or (1, out_features)

    n_inputs / n_outputs stay UNPADDED (full-dim blocks are legal on TPU and a
    narrow unpadded output avoids 16x output HBM traffic).  Zero padding of the
    hidden dim is exact: padded W cols/rows and padded b entries are 0, so the
    padded hidden activations are 0 and ReLU(0)=0.
    """
    if isinstance(compute_dtype, str) and compute_dtype == "auto":
        # bf16 operands run the MXU at its native fast rate on v5e/v6e/v7x and
        # halve weight HBM/VMEM bytes; accumulation stays f32 in the kernel.
        compute_dtype = jnp.bfloat16
    cdt = jnp.dtype(compute_dtype)

    n_in, hidden = w1.shape
    d_h = _round_up(hidden, _LANE)
    pad_h = d_h - hidden

    def _b2d(b):
        return jnp.asarray(b).reshape(1, -1)

    w1_p = jnp.pad(w1, ((0, 0), (0, pad_h))).astype(cdt)
    w2_p = jnp.pad(w2, ((0, pad_h), (0, pad_h))).astype(cdt)
    w3_p = jnp.pad(w3, ((0, pad_h), (0, 0))).astype(cdt)
    b1_p = jnp.pad(_b2d(b1), ((0, 0), (0, pad_h))).astype(jnp.float32)
    b2_p = jnp.pad(_b2d(b2), ((0, 0), (0, pad_h))).astype(jnp.float32)
    b3_p = _b2d(b3).astype(jnp.float32)
    return w1_p, b1_p, w2_p, b2_p, w3_p, b3_p


def _vmem_capacity_bytes() -> int:
    try:
        return int(pltpu.get_tpu_info().vmem_capacity_bytes)
    except Exception:
        return 64 * 1024 * 1024  # conservative default (v7x per-TC VMEM)


def _resident_spec(block_shape):
    """Constant-index_map (VMEM-resident across all grid steps) operand.
    Single-buffered: a constant block never benefits from the second pipeline
    buffer, so Buffered(1) halves its resident VMEM footprint."""
    const = lambda i: (0, 0)
    try:
        return pl.BlockSpec(block_shape, const,
                            pipeline_mode=pl.Buffered(buffer_count=1))
    except TypeError:  # pipeline_mode unavailable -> fall back to default
        return pl.BlockSpec(block_shape, const)


# --------------------------------------------------------------------------
# Forward pass (hot path).
# --------------------------------------------------------------------------
@functools.partial(jax.jit, static_argnames=("tile_b",))
def new_basic_mlp(x, w1_p, b1_p, w2_p, b2_p, w3_p, b3_p, *, tile_b=1024):
    """Fused MLP forward.

    x:  (B, n_inputs) in its original dtype (no wrapper-side cast/pad of the
        feature dim; the kernel casts rows to the weight dtype in-register).
    wK_p / bK_p: outputs of prepare_params (hidden dim pre-padded to 128).
    Returns (B, n_outputs) in x's dtype.
    """
    B, n_in = x.shape
    d_h = w1_p.shape[1]
    n_out = w3_p.shape[1]
    out_dtype = x.dtype

    x_it = jnp.dtype(x.dtype).itemsize
    w_it = jnp.dtype(w1_p.dtype).itemsize
    o_it = jnp.dtype(out_dtype).itemsize

    # ---- generation-aware VMEM budget (64 MiB v7x vs 128 MiB v5e/v6e) -----
    vmem_cap = _vmem_capacity_bytes()
    budget = int(vmem_cap * 0.70)  # headroom for compiler temporaries / regalloc

    w_bytes = ((w1_p.size + w2_p.size + w3_p.size) * w_it
               + (b1_p.size + b2_p.size + b3_p.size) * 4)
    # Per batch-row VMEM: X tile (2 buffers) + out tile (2 buffers)
    # + f32 h1/h2 intermediates + their compute-dtype copies.
    row_bytes = (2 * n_in * x_it + 2 * n_out * o_it
                 + 2 * d_h * 4 + 2 * d_h * w_it)

    # TODO(synk): if w_bytes exceeds ~half the VMEM budget (very wide hidden
    # layers, esp. on v7x's 64 MiB VMEM), tile the hidden/contraction dims
    # instead of keeping all three weights resident.
    avail = max(budget - w_bytes, 0)

    sub = max(8, 32 // x_it)  # sublane granule: f32 -> 8, bf16 -> 16
    tb_cap = max(sub, (avail // max(row_bytes, 1)) // sub * sub)
    tb_req = max(sub, min(tile_b, tb_cap))

    if B <= tb_req:
        # Single tile: a full-dim batch block needs no alignment or padding.
        num_tiles, tb, b_pad = 1, B, B
    else:
        # Balance tiles so the last one is not mostly zero padding, and keep
        # >= 2 tiles so the v7x megacore split has batch blocks for both TCs.
        num_tiles = max(_cdiv(B, tb_req), 2)
        tb = _round_up(_cdiv(B, num_tiles), sub)
        b_pad = num_tiles * tb

    x_in = x if b_pad == B else jnp.pad(x, ((0, b_pad - B), (0, 0)))

    vmem_limit = min(vmem_cap,
                     max(w_bytes + tb * row_bytes + (4 << 20), 32 << 20))

    flops = 2 * b_pad * (n_in * d_h + d_h * d_h + d_h * n_out)
    bytes_accessed = (b_pad * n_in * x_it          # X
                      + w_bytes                    # resident weights + biases
                      + b_pad * n_out * o_it)      # output

    out = pl.pallas_call(
        _mlp_kernel,
        out_shape=jax.ShapeDtypeStruct((b_pad, n_out), out_dtype),
        grid=(num_tiles,),
        in_specs=[
            pl.BlockSpec((tb, n_in), lambda i: (i, 0)),  # X tile (pipelined)
            _resident_spec((n_in, d_h)),                 # W1 (resident)
            _resident_spec((1, d_h)),                    # b1
            _resident_spec((d_h, d_h)),                  # W2
            _resident_spec((1, d_h)),                    # b2
            _resident_spec((d_h, n_out)),                # W3
            _resident_spec((1, n_out)),                  # b3
        ],
        out_specs=pl.BlockSpec((tb, n_out), lambda i: (i, 0)),
        compiler_params=pltpu.CompilerParams(
            dimension_semantics=("parallel",),           # megacore on v7x
            vmem_limit_bytes=int(vmem_limit),
        ),
        cost_estimate=pl.CostEstimate(
            flops=int(flops), transcendentals=0,
            bytes_accessed=int(bytes_accessed)),
    )(x_in, w1_p, b1_p, w2_p, b2_p, w3_p, b3_p)

    return out if b_pad == B else out[:B]


# --------------------------------------------------------------------------
# Deterministic init matching torch.nn.Linear's U(-1/sqrt(fan_in), 1/sqrt(fan_in)).
# Returns weight (fan_in, fan_out) (already transposed) and bias (1, fan_out).
# --------------------------------------------------------------------------
def _init_linear(key, fan_in, fan_out, dtype=jnp.float32):
    kw, kb = jax.random.split(key)
    bound = 1.0 / jnp.sqrt(jnp.array(fan_in, dtype))
    w = jax.random.uniform(kw, (fan_in, fan_out), dtype, -bound, bound)
    b = jax.random.uniform(kb, (1, fan_out), dtype, -bound, bound)
    return w, b


if __name__ == "__main__":
    # Small shapes consistent with the module: batch=8, n_inputs=16, hidden=32, n_outputs=8
    batch, n_inputs, hidden, n_outputs = 8, 16, 32, 8

    key = jax.random.PRNGKey(0)
    kx, k1, k2, k3 = jax.random.split(key, 4)

    x = jax.random.normal(kx, (batch, n_inputs), jnp.float32)
    w1, b1 = _init_linear(k1, n_inputs, hidden)
    w2, b2 = _init_linear(k2, hidden, hidden)
    w3, b3 = _init_linear(k3, hidden, n_outputs)

    # Pure-JAX reference for the kernel semantics.
    ref = jnp.maximum(x @ w1 + b1, 0.0)
    ref = jnp.maximum(ref @ w2 + b2, 0.0)
    ref = ref @ w3 + b3

    # f32 operand path: full precision on the MXU (tight tolerance check).
    params_f32 = prepare_params(w1, b1, w2, b2, w3, b3,
                                compute_dtype=jnp.float32)
    out_f32 = jax.block_until_ready(new_basic_mlp(x, *params_f32))
    assert out_f32.shape == (batch, n_outputs)
    assert jnp.allclose(out_f32, ref, atol=1e-5, rtol=1e-5)

    # Default ("auto") path: bf16 operands (fast MXU path on v5e/v6e/v7x),
    # f32 accumulation and f32 bias/ReLU epilogue.
    params_bf16 = prepare_params(w1, b1, w2, b2, w3, b3)
    out_bf16 = jax.block_until_ready(new_basic_mlp(x, *params_bf16))
    assert out_bf16.shape == (batch, n_outputs)
    assert jnp.allclose(out_bf16, ref, atol=1e-1, rtol=1e-1)

    print("KERNEL_OK")
</pallas_src>

<mosaic_0001>
module attributes {stable_mosaic.version = 11 : i64} {
  func.func @_mlp_kernel(%arg0: i32, %arg1: memref<8x16xf32, #tpu.memory_space<vmem>>, %arg2: memref<16x128xf32, #tpu.memory_space<vmem>>, %arg3: memref<1x128xf32, #tpu.memory_space<vmem>>, %arg4: memref<128x128xf32, #tpu.memory_space<vmem>>, %arg5: memref<1x128xf32, #tpu.memory_space<vmem>>, %arg6: memref<128x8xf32, #tpu.memory_space<vmem>>, %arg7: memref<1x8xf32, #tpu.memory_space<vmem>>, %arg8: memref<8x8xf32, #tpu.memory_space<vmem>>) attributes {dimension_semantics = [#tpu.dimension_semantics<parallel>], iteration_bounds = array<i64: 1>, scalar_prefetch = 0 : i64, scratch_operands = 0 : i64, tpu.core_type = #tpu.core_type<tc>, window_params = [{transform_indices = @transform_0, window_bounds = array<i64: 8, 16>}, {pipeline_mode = #tpu.pipeline_mode<synchronous>, transform_indices = @transform_1, window_bounds = array<i64: 16, 128>}, {pipeline_mode = #tpu.pipeline_mode<synchronous>, transform_indices = @transform_2, window_bounds = array<i64: 1, 128>}, {pipeline_mode = #tpu.pipeline_mode<synchronous>, transform_indices = @transform_3, window_bounds = array<i64: 128, 128>}, {pipeline_mode = #tpu.pipeline_mode<synchronous>, transform_indices = @transform_4, window_bounds = array<i64: 1, 128>}, {pipeline_mode = #tpu.pipeline_mode<synchronous>, transform_indices = @transform_5, window_bounds = array<i64: 128, 8>}, {pipeline_mode = #tpu.pipeline_mode<synchronous>, transform_indices = @transform_6, window_bounds = array<i64: 1, 8>}, {transform_indices = @transform_7, window_bounds = array<i64: 8, 8>}]} {
    %c0 = arith.constant 0 : index
    %c0_0 = arith.constant 0 : index
    %0 = vector.load %arg1[%c0, %c0_0] : memref<8x16xf32, #tpu.memory_space<vmem>>, vector<8x16xf32>
    %c0_1 = arith.constant 0 : index
    %c0_2 = arith.constant 0 : index
    %1 = vector.load %arg2[%c0_1, %c0_2] : memref<16x128xf32, #tpu.memory_space<vmem>>, vector<16x128xf32>
    %cst = arith.constant dense<0.000000e+00> : vector<8x128xf32>
    %2 = tpu.matmul %0, %1, %cst {dimension_numbers = #tpu.dot_dimension_numbers<[1], [0], [0], [1], [0, 0, 1, 1], [], []>} : vector<8x16xf32>, vector<16x128xf32>, vector<8x128xf32> -> vector<8x128xf32>
    %c0_3 = arith.constant 0 : index
    %c0_4 = arith.constant 0 : index
    %3 = vector.load %arg3[%c0_3, %c0_4] : memref<1x128xf32, #tpu.memory_space<vmem>>, vector<1x128xf32>
    %4 = vector.broadcast %3 : vector<1x128xf32> to vector<8x128xf32>
    %5 = arith.addf %2, %4 : vector<8x128xf32>
    %cst_5 = arith.constant 0.000000e+00 : f32
    %6 = vector.broadcast %cst_5 : f32 to vector<8x128xf32>
    %7 = arith.maximumf %5, %6 : vector<8x128xf32>
    %c0_6 = arith.constant 0 : index
    %c0_7 = arith.constant 0 : index
    %8 = vector.load %arg4[%c0_6, %c0_7] : memref<128x128xf32, #tpu.memory_space<vmem>>, vector<128x128xf32>
    %cst_8 = arith.constant dense<0.000000e+00> : vector<8x128xf32>
    %9 = tpu.matmul %7, %8, %cst_8 {dimension_numbers = #tpu.dot_dimension_numbers<[1], [0], [0], [1], [0, 0, 1, 1], [], []>} : vector<8x128xf32>, vector<128x128xf32>, vector<8x128xf32> -> vector<8x128xf32>
    %c0_9 = arith.constant 0 : index
    %c0_10 = arith.constant 0 : index
    %10 = vector.load %arg5[%c0_9, %c0_10] : memref<1x128xf32, #tpu.memory_space<vmem>>, vector<1x128xf32>
    %11 = vector.broadcast %10 : vector<1x128xf32> to vector<8x128xf32>
    %12 = arith.addf %9, %11 : vector<8x128xf32>
    %cst_11 = arith.constant 0.000000e+00 : f32
    %13 = vector.broadcast %cst_11 : f32 to vector<8x128xf32>
    %14 = arith.maximumf %12, %13 : vector<8x128xf32>
    %c0_12 = arith.constant 0 : index
    %c0_13 = arith.constant 0 : index
    %15 = vector.load %arg6[%c0_12, %c0_13] : memref<128x8xf32, #tpu.memory_space<vmem>>, vector<128x8xf32>
    %cst_14 = arith.constant dense<0.000000e+00> : vector<8x8xf32>
    %16 = tpu.matmul %14, %15, %cst_14 {dimension_numbers = #tpu.dot_dimension_numbers<[1], [0], [0], [1], [0, 0, 1, 1], [], []>} : vector<8x128xf32>, vector<128x8xf32>, vector<8x8xf32> -> vector<8x8xf32>
    %c0_15 = arith.constant 0 : index
    %c0_16 = arith.constant 0 : index
    %17 = vector.load %arg7[%c0_15, %c0_16] : memref<1x8xf32, #tpu.memory_space<vmem>>, vector<1x8xf32>
    %18 = vector.broadcast %17 : vector<1x8xf32> to vector<8x8xf32>
    %19 = arith.addf %16, %18 : vector<8x8xf32>
    %c0_17 = arith.constant 0 : index
    %c0_18 = arith.constant 0 : index
    %20 = vector.load %arg8[%c0_17, %c0_18] : memref<8x8xf32, #tpu.memory_space<vmem>>, vector<8x8xf32>
    tpu.vector_store %arg8[%c0_17, %c0_18], %19 {strides = array<i32>} : memref<8x8xf32, #tpu.memory_space<vmem>>, vector<8x8xf32>,
    return
  }
  func.func @transform_0(%arg0: i32) -> (i32, i32) {
    %c0_i32 = arith.constant 0 : i32
    %c0_i32_0 = arith.constant 0 : i32
    return %arg0, %c0_i32 : i32, i32
  }
  func.func @transform_1(%arg0: i32) -> (i32, i32) {
    %c0_i32 = arith.constant 0 : i32
    %c0_i32_0 = arith.constant 0 : i32
    %c0_i32_1 = arith.constant 0 : i32
    return %c0_i32, %c0_i32_0 : i32, i32
  }
  func.func @transform_2(%arg0: i32) -> (i32, i32) {
    %c0_i32 = arith.constant 0 : i32
    %c0_i32_0 = arith.constant 0 : i32
    %c0_i32_1 = arith.constant 0 : i32
    return %c0_i32, %c0_i32_0 : i32, i32
  }
  func.func @transform_3(%arg0: i32) -> (i32, i32) {
    %c0_i32 = arith.constant 0 : i32
    %c0_i32_0 = arith.constant 0 : i32
    %c0_i32_1 = arith.constant 0 : i32
    return %c0_i32, %c0_i32_0 : i32, i32
  }
  func.func @transform_4(%arg0: i32) -> (i32, i32) {
    %c0_i32 = arith.constant 0 : i32
    %c0_i32_0 = arith.constant 0 : i32
    %c0_i32_1 = arith.constant 0 : i32
    return %c0_i32, %c0_i32_0 : i32, i32
  }
  func.func @transform_5(%arg0: i32) -> (i32, i32) {
    %c0_i32 = arith.constant 0 : i32
    %c0_i32_0 = arith.constant 0 : i32
    %c0_i32_1 = arith.constant 0 : i32
    return %c0_i32, %c0_i32_0 : i32, i32
  }
  func.func @transform_6(%arg0: i32) -> (i32, i32) {
    %c0_i32 = arith.constant 0 : i32
    %c0_i32_0 = arith.constant 0 : i32
    %c0_i32_1 = arith.constant 0 : i32
    return %c0_i32, %c0_i32_0 : i32, i32
  }
  func.func @transform_7(%arg0: i32) -> (i32, i32) {
    %c0_i32 = arith.constant 0 : i32
    %c0_i32_0 = arith.constant 0 : i32
    return %arg0, %c0_i32 : i32, i32
  }
}

</mosaic_0001>

<llo_original>
// kernel: new_basic_mlp.1
$region0: #{new_basic_mlp.1}
  #allocation0 [shape = 'u32[]', space=smem, size = 0x4, offset = 0x4, fixed_abs, tag = 'smem constant byte address 0x4 - core index']
  #allocation1 [shape = 'u32[144,128]{1,0:T(1,128)}', space=vmem, size = 0x12000, scoped, tag = 'internal scratch']
  %s0 = inlined_call_operand.vmem [shape: f32[8,16], index: 0, kind: input, shape index: {}]
  %s1 = inlined_call_operand.hbm [shape: f32[16,128], index: 1, kind: input, shape index: {}]
  %s2 = inlined_call_operand.vmem [shape: f32[1,128], index: 2, kind: input, shape index: {}]
  %s3 = inlined_call_operand.vmem [shape: f32[128,128], index: 3, kind: input, shape index: {}]
  %s4 = inlined_call_operand.hbm [shape: f32[1,128], index: 4, kind: input, shape index: {}]
  %s5 = inlined_call_operand.vmem [shape: f32[128,8], index: 5, kind: input, shape index: {}]
  %s6 = inlined_call_operand.vmem [shape: f32[1,8], index: 6, kind: input, shape index: {}]
  %s7 = inlined_call_operand.hbm [shape: f32[8,8], index: 7, kind: output, shape index: {}]
  %s8 = sld [smem:[#allocation0]]
  $region46: #{new_basic_mlp.1} parent=0
    _
  %s10 = ssub.s32 1, %s8
  %s11 = scalar_select 0, %s10, %s8
  $region1: #{new_basic_mlp.1} parent=0
    #allocation2 [shape = 'u8[8192]{0}', space=vmem, size = 0x2000, scoped, tag = 'input window, operand 1, single buffered']
    #allocation3 [shape = 's32[1]{0}', space=sflag, size = 0x4, scoped, tag = 'scoped memory for new_basic_mlp.1']
    #allocation4 [shape = 's32[1]{0}', space=sflag, size = 0x4, scoped, tag = 'scoped memory for new_basic_mlp.1']
    #allocation5 [shape = 'u8[512]{0}', space=vmem, size = 0x400, scoped, tag = 'input window, operand 4, single buffered']
    #allocation6 [shape = 's32[1]{0}', space=sflag, size = 0x4, scoped, tag = 'scoped memory for new_basic_mlp.1']
    #allocation7 [shape = 'u8[4096]{0}', space=vmem, size = 0x1000, scoped, tag = 'output window, operand 0, single buffered']
    %12 = vsyncpa [#allocation3], 0
    %13 = vsyncpa [#allocation6], 0
    %14 = vsyncpa [#allocation4], 0
    // Predicated region
    $region2: #{new_basic_mlp.1} parent=1 // pred_check
      _
    $region3: #{new_basic_mlp.1} parent=1 // pred_check_branch
      %16 = sbr.rel (0) target = $region5
    $region4: #{new_basic_mlp.1} parent=1 // pred_region
      _
    $region5: #{new_basic_mlp.1} parent=1 // pred_fallthru
      _
    // Predicated region
    $region6: #{new_basic_mlp.1} parent=1 // pred_check
      _
    $region7: #{new_basic_mlp.1} parent=1 // pred_check_branch
      %18 = sbr.rel (0) target = $region9
    $region8: #{new_basic_mlp.1} parent=1 // pred_region
      %s20 = ssub.s32 256, 256
      %21 = vsyncadd [#allocation3], %s20
      %s22 = sshll.u32 [#allocation2], 4
      %s23 = int_to_ptr.vmem [resolvable:$true] %s22
      %28 = dma.hbm_to_vmem [thread:$0]  %s1, 256, %s23, [#allocation3], 128, 128, 8
    $region9: #{new_basic_mlp.1} parent=1 // pred_fallthru
      _
    // Predicated region
    $region10: #{new_basic_mlp.1} parent=1 // pred_check
      _
    $region11: #{new_basic_mlp.1} parent=1 // pred_check_branch
      %30 = sbr.rel (0) target = $region13
    $region12: #{new_basic_mlp.1} parent=1 // pred_region
      _
    $region13: #{new_basic_mlp.1} parent=1 // pred_fallthru
      _
    // Predicated region
    $region14: #{new_basic_mlp.1} parent=1 // pred_check
      _
    $region15: #{new_basic_mlp.1} parent=1 // pred_check_branch
      %32 = sbr.rel (0) target = $region17
    $region16: #{new_basic_mlp.1} parent=1 // pred_region
      _
    $region17: #{new_basic_mlp.1} parent=1 // pred_fallthru
      _
    // Predicated region
    $region18: #{new_basic_mlp.1} parent=1 // pred_check
      _
    $region19: #{new_basic_mlp.1} parent=1 // pred_check_branch
      %34 = sbr.rel (0) target = $region21
    $region20: #{new_basic_mlp.1} parent=1 // pred_region
      %s36 = ssub.s32 16, 16
      %37 = vsyncadd [#allocation6], %s36
      %s39 = sshll.u32 [#allocation5], 4
      %s40 = int_to_ptr.vmem [resolvable:$true] %s39
      %42 = dma.hbm_to_vmem [thread:$0]  %s4, 16, %s40, [#allocation6]
    $region21: #{new_basic_mlp.1} parent=1 // pred_fallthru
      _
    // Predicated region
    $region22: #{new_basic_mlp.1} parent=1 // pred_check
      _
    $region23: #{new_basic_mlp.1} parent=1 // pred_check_branch
      %44 = sbr.rel (0) target = $region25
    $region24: #{new_basic_mlp.1} parent=1 // pred_region
      _
    $region25: #{new_basic_mlp.1} parent=1 // pred_fallthru
      _
    // Predicated region
    $region26: #{new_basic_mlp.1} parent=1 // pred_check
      _
    $region27: #{new_basic_mlp.1} parent=1 // pred_check_branch
      %46 = sbr.rel (0) target = $region29
    $region28: #{new_basic_mlp.1} parent=1 // pred_region
      _
    $region29: #{new_basic_mlp.1} parent=1 // pred_fallthru
      _
    // Predicated region
    $region30: #{new_basic_mlp.1} parent=1 // pred_check
      _
    $region31: #{new_basic_mlp.1} parent=1 // pred_check_branch
      %48 = sbr.rel (0) target = $region33
    $region32: #{new_basic_mlp.1} parent=1 // pred_region
      %49 = dma.done [#allocation3], 256
    $region33: #{new_basic_mlp.1} parent=1 // pred_fallthru
      _
    // Predicated region
    $region34: #{new_basic_mlp.1} parent=1 // pred_check
      _
    $region35: #{new_basic_mlp.1} parent=1 // pred_check_branch
      %51 = sbr.rel (0) target = $region37
    $region36: #{new_basic_mlp.1} parent=1 // pred_region
      %52 = dma.done [#allocation6], 16
    $region37: #{new_basic_mlp.1} parent=1 // pred_fallthru
      _
    %v53 = vld [vmem:[%s0] sm:$0xff]
    %v54 = vld [vmem:[#allocation2] sm:$0xff]
    %v55 = vld [vmem:[#allocation2 + $0x8] sm:$0xff]
    %v56 = vld [vmem:[%s2] sm:$0x1]
    %v58 = vlaneseq
    %v59 = vshrl.u32 %v58, 7
    %v60 = vsub.s32 0, %v59
    %v61 = vrot.slane %v56, %v60
    %vm63 = vcmask 130048
    %v65 = vsel %vm63, %v53, 0
    %67 = vmatprep.subr.mxu0 0.0
    %68 = vmatpush1.msra.mxu0 0.0
    %69 = vmatprep.subr.mxu0 0.0
    %70 = vmatpush1.msra.mxu0 0.0
    %71 = vmatprep.subr.mxu0 0.0
    %72 = vmatpush1.msra.mxu0 0.0
    %73 = vmatprep.subr.mxu0 0.0
    %74 = vmatpush1.msra.mxu0 0.0
    %75 = vmatprep.subr.mxu0 0.0
    %76 = vmatpush1.msra.mxu0 0.0
    %77 = vmatprep.subr.mxu0 0.0
    %78 = vmatpush1.msra.mxu0 0.0
    %79 = vmatprep.subr.mxu0 0.0
    %80 = vmatpush1.msra.mxu0 0.0
    %81 = vmatprep.subr.mxu0 0.0
    %82 = vmatpush1.msra.mxu0 0.0
    %83 = vmatprep.subr.mxu0 0.0
    %84 = vmatpush1.msra.mxu0 0.0
    %85 = vmatprep.subr.mxu0 0.0
    %86 = vmatpush1.msra.mxu0 0.0
    %87 = vmatprep.subr.mxu0 0.0
    %88 = vmatpush1.msra.mxu0 0.0
    %89 = vmatprep.subr.mxu0 0.0
    %90 = vmatpush1.msra.mxu0 0.0
    %91 = vmatprep.subr.mxu0 0.0
    %92 = vmatpush1.msra.mxu0 0.0
    %93 = vmatprep.subr.mxu0 0.0
    %94 = vmatpush1.msra.mxu0 0.0
    %95 = vmatprep.subr.mxu0 0.0
    %96 = vmatpush1.msra.mxu0 %v55
    %97 = vmatprep.subr.mxu0 0.0
    %98 = vmatpush1.msra.mxu0 %v54
    %99 = vmatprep.subr.mxu0 0.0
    %100 = vmatpush2.msra.mxu0 0.0
    %101 = vmatprep.subr.mxu0 0.0
    %102 = vmatpush2.msra.mxu0 0.0
    %103 = vmatprep.subr.mxu0 0.0
    %104 = vmatpush2.msra.mxu0 0.0
    %105 = vmatprep.subr.mxu0 0.0
    %106 = vmatpush2.msra.mxu0 0.0
    %107 = vmatprep.subr.mxu0 0.0
    %108 = vmatpush2.msra.mxu0 0.0
    %109 = vmatprep.subr.mxu0 0.0
    %110 = vmatpush2.msra.mxu0 0.0
    %111 = vmatprep.subr.mxu0 0.0
    %112 = vmatpush2.msra.mxu0 0.0
    %113 = vmatprep.subr.mxu0 0.0
    %114 = vmatpush2.msra.mxu0 0.0
    %115 = vmatprep.subr.mxu0 0.0
    %116 = vmatpush2.msra.mxu0 0.0
    %117 = vmatprep.subr.mxu0 0.0
    %118 = vmatpush2.msra.mxu0 0.0
    %119 = vmatprep.subr.mxu0 0.0
    %120 = vmatpush2.msra.mxu0 0.0
    %121 = vmatprep.subr.mxu0 0.0
    %122 = vmatpush2.msra.mxu0 0.0
    %123 = vmatprep.subr.mxu0 0.0
    %124 = vmatpush2.msra.mxu0 0.0
    %125 = vmatprep.subr.mxu0 0.0
    %126 = vmatpush2.msra.mxu0 0.0
    %127 = vmatprep.subr.mxu0 0.0
    %128 = vmatpush2.msra.mxu0 0.0
    %129 = vmatprep.subr.mxu0 0.0
    %130 = vmatpush2.msra.mxu0 0.0
    %131 = vmatprep.mubr.f32.mxu0 0.0
    %132 = vmatmul.mubr.f32.gmra.mxu0 %v65
    %v133 = vpop.f32.mrf.mxu0
    %v134 = vadd.f32 %v61, %v133
    %v135 = vpop.f32.mrf.mxu0
    %136 = vdwg.mxu0
    %v137 = vmax.f32 %v134, 0.0
    %v138 = vld [vmem:[%s3] sm:$0xff]
    %v139 = vld [vmem:[%s3 + $0x8] sm:$0xff]
    %v140 = vld [vmem:[%s3 + $0x10] sm:$0xff]
    %v141 = vld [vmem:[%s3 + $0x18] sm:$0xff]
    %v142 = vld [vmem:[%s3 + $0x20] sm:$0xff]
    %v143 = vld [vmem:[%s3 + $0x28] sm:$0xff]
    %v144 = vld [vmem:[%s3 + $0x30] sm:$0xff]
    %v145 = vld [vmem:[%s3 + $0x38] sm:$0xff]
    %v146 = vld [vmem:[%s3 + $0x40] sm:$0xff]
    %v147 = vld [vmem:[%s3 + $0x48] sm:$0xff]
    %v148 = vld [vmem:[%s3 + $0x50] sm:$0xff]
    %v149 = vld [vmem:[%s3 + $0x58] sm:$0xff]
    %v150 = vld [vmem:[%s3 + $0x60] sm:$0xff]
    %v151 = vld [vmem:[%s3 + $0x68] sm:$0xff]
    %v152 = vld [vmem:[%s3 + $0x70] sm:$0xff]
    %v153 = vld [vmem:[%s3 + $0x78] sm:$0xff]
    %v154 = vld [vmem:[#allocation5] sm:$0x1]
    %v156 = vlaneseq
    %v157 = vshrl.u32 %v156, 7
    %v158 = vsub.s32 0, %v157
    %v159 = vrot.slane %v154, %v158
    %161 = vmatprep.subr.mxu0 0.0
    %162 = vmatpush1.msra.mxu0 %v153
    %163 = vmatprep.subr.mxu0 0.0
    %164 = vmatpush1.msra.mxu0 %v152
    %165 = vmatprep.subr.mxu0 0.0
    %166 = vmatpush1.msra.mxu0 %v151
    %167 = vmatprep.subr.mxu0 0.0
    %168 = vmatpush1.msra.mxu0 %v150
    %169 = vmatprep.subr.mxu0 0.0
    %170 = vmatpush1.msra.mxu0 %v149
    %171 = vmatprep.subr.mxu0 0.0
    %172 = vmatpush1.msra.mxu0 %v148
    %173 = vmatprep.subr.mxu0 0.0
    %174 = vmatpush1.msra.mxu0 %v147
    %175 = vmatprep.subr.mxu0 0.0
    %176 = vmatpush1.msra.mxu0 %v146
    %177 = vmatprep.subr.mxu0 0.0
    %178 = vmatpush1.msra.mxu0 %v145
    %179 = vmatprep.subr.mxu0 0.0
    %180 = vmatpush1.msra.mxu0 %v144
    %181 = vmatprep.subr.mxu0 0.0
    %182 = vmatpush1.msra.mxu0 %v143
    %183 = vmatprep.subr.mxu0 0.0
    %184 = vmatpush1.msra.mxu0 %v142
    %185 = vmatprep.subr.mxu0 0.0
    %186 = vmatpush1.msra.mxu0 %v141
    %187 = vmatprep.subr.mxu0 0.0
    %188 = vmatpush1.msra.mxu0 %v140
    %189 = vmatprep.subr.mxu0 0.0
    %190 = vmatpush1.msra.mxu0 %v139
    %191 = vmatprep.subr.mxu0 0.0
    %192 = vmatpush1.msra.mxu0 %v138
    %193 = vmatprep.subr.mxu0 0.0
    %194 = vmatpush2.msra.mxu0 0.0
    %195 = vmatprep.subr.mxu0 0.0
    %196 = vmatpush2.msra.mxu0 0.0
    %197 = vmatprep.subr.mxu0 0.0
    %198 = vmatpush2.msra.mxu0 0.0
    %199 = vmatprep.subr.mxu0 0.0
    %200 = vmatpush2.msra.mxu0 0.0
    %201 = vmatprep.subr.mxu0 0.0
    %202 = vmatpush2.msra.mxu0 0.0
    %203 = vmatprep.subr.mxu0 0.0
    %204 = vmatpush2.msra.mxu0 0.0
    %205 = vmatprep.subr.mxu0 0.0
    %206 = vmatpush2.msra.mxu0 0.0
    %207 = vmatprep.subr.mxu0 0.0
    %208 = vmatpush2.msra.mxu0 0.0
    %209 = vmatprep.subr.mxu0 0.0
    %210 = vmatpush2.msra.mxu0 0.0
    %211 = vmatprep.subr.mxu0 0.0
    %212 = vmatpush2.msra.mxu0 0.0
    %213 = vmatprep.subr.mxu0 0.0
    %214 = vmatpush2.msra.mxu0 0.0
    %215 = vmatprep.subr.mxu0 0.0
    %216 = vmatpush2.msra.mxu0 0.0
    %217 = vmatprep.subr.mxu0 0.0
    %218 = vmatpush2.msra.mxu0 0.0
    %219 = vmatprep.subr.mxu0 0.0
    %220 = vmatpush2.msra.mxu0 0.0
    %221 = vmatprep.subr.mxu0 0.0
    %222 = vmatpush2.msra.mxu0 0.0
    %223 = vmatprep.subr.mxu0 0.0
    %224 = vmatpush2.msra.mxu0 0.0
    %225 = vmatprep.mubr.f32.mxu0 0.0
    %226 = vmatmul.mubr.f32.gmra.mxu0 %v137
    %v227 = vpop.f32.mrf.mxu0
    %v228 = vadd.f32 %v159, %v227
    %v229 = vpop.f32.mrf.mxu0
    %230 = vdwg.mxu0
    %v231 = vmax.f32 %v228, 0.0
    %v232 = vld [vmem:[%s5] sm:$0xff]
    %v233 = vld [vmem:[%s5 + $0x8] sm:$0xff]
    %v234 = vld [vmem:[%s5 + $0x10] sm:$0xff]
    %v235 = vld [vmem:[%s5 + $0x18] sm:$0xff]
    %v236 = vld [vmem:[%s5 + $0x20] sm:$0xff]
    %v237 = vld [vmem:[%s5 + $0x28] sm:$0xff]
    %v238 = vld [vmem:[%s5 + $0x30] sm:$0xff]
    %v239 = vld [vmem:[%s5 + $0x38] sm:$0xff]
    %v240 = vld [vmem:[%s5 + $0x40] sm:$0xff]
    %v241 = vld [vmem:[%s5 + $0x48] sm:$0xff]
    %v242 = vld [vmem:[%s5 + $0x50] sm:$0xff]
    %v243 = vld [vmem:[%s5 + $0x58] sm:$0xff]
    %v244 = vld [vmem:[%s5 + $0x60] sm:$0xff]
    %v245 = vld [vmem:[%s5 + $0x68] sm:$0xff]
    %v246 = vld [vmem:[%s5 + $0x70] sm:$0xff]
    %v247 = vld [vmem:[%s5 + $0x78] sm:$0xff]
    %v248 = vld [vmem:[%s6] sm:$0x1]
    %v250 = vlaneseq
    %v251 = vshrl.u32 %v250, 7
    %v252 = vsub.s32 0, %v251
    %v253 = vrot.slane %v248, %v252
    %255 = vmatprep.subr.mxu0 0.0
    %256 = vmatpush1.msra.mxu0 %v247
    %257 = vmatprep.subr.mxu0 0.0
    %258 = vmatpush1.msra.mxu0 %v246
    %259 = vmatprep.subr.mxu0 0.0
    %260 = vmatpush1.msra.mxu0 %v245
    %261 = vmatprep.subr.mxu0 0.0
    %262 = vmatpush1.msra.mxu0 %v244
    %263 = vmatprep.subr.mxu0 0.0
    %264 = vmatpush1.msra.mxu0 %v243
    %265 = vmatprep.subr.mxu0 0.0
    %266 = vmatpush1.msra.mxu0 %v242
    %267 = vmatprep.subr.mxu0 0.0
    %268 = vmatpush1.msra.mxu0 %v241
    %269 = vmatprep.subr.mxu0 0.0
    %270 = vmatpush1.msra.mxu0 %v240
    %271 = vmatprep.subr.mxu0 0.0
    %272 = vmatpush1.msra.mxu0 %v239
    %273 = vmatprep.subr.mxu0 0.0
    %274 = vmatpush1.msra.mxu0 %v238
    %275 = vmatprep.subr.mxu0 0.0
    %276 = vmatpush1.msra.mxu0 %v237
    %277 = vmatprep.subr.mxu0 0.0
    %278 = vmatpush1.msra.mxu0 %v236
    %279 = vmatprep.subr.mxu0 0.0
    %280 = vmatpush1.msra.mxu0 %v235
    %281 = vmatprep.subr.mxu0 0.0
    %282 = vmatpush1.msra.mxu0 %v234
    %283 = vmatprep.subr.mxu0 0.0
    %284 = vmatpush1.msra.mxu0 %v233
    %285 = vmatprep.subr.mxu0 0.0
    %286 = vmatpush1.msra.mxu0 %v232
    %287 = vmatprep.subr.mxu0 0.0
    %288 = vmatpush2.msra.mxu0 0.0
    %289 = vmatprep.subr.mxu0 0.0
    %290 = vmatpush2.msra.mxu0 0.0
    %291 = vmatprep.subr.mxu0 0.0
    %292 = vmatpush2.msra.mxu0 0.0
    %293 = vmatprep.subr.mxu0 0.0
    %294 = vmatpush2.msra.mxu0 0.0
    %295 = vmatprep.subr.mxu0 0.0
    %296 = vmatpush2.msra.mxu0 0.0
    %297 = vmatprep.subr.mxu0 0.0
    %298 = vmatpush2.msra.mxu0 0.0
    %299 = vmatprep.subr.mxu0 0.0
    %300 = vmatpush2.msra.mxu0 0.0
    %301 = vmatprep.subr.mxu0 0.0
    %302 = vmatpush2.msra.mxu0 0.0
    %303 = vmatprep.subr.mxu0 0.0
    %304 = vmatpush2.msra.mxu0 0.0
    %305 = vmatprep.subr.mxu0 0.0
    %306 = vmatpush2.msra.mxu0 0.0
    %307 = vmatprep.subr.mxu0 0.0
    %308 = vmatpush2.msra.mxu0 0.0
    %309 = vmatprep.subr.mxu0 0.0
    %310 = vmatpush2.msra.mxu0 0.0
    %311 = vmatprep.subr.mxu0 0.0
    %312 = vmatpush2.msra.mxu0 0.0
    %313 = vmatprep.subr.mxu0 0.0
    %314 = vmatpush2.msra.mxu0 0.0
    %315 = vmatprep.subr.mxu0 0.0
    %316 = vmatpush2.msra.mxu0 0.0
    %317 = vmatprep.subr.mxu0 0.0
    %318 = vmatpush2.msra.mxu0 0.0
    %319 = vmatprep.mubr.f32.mxu0 0.0
    %320 = vmatmul.mubr.f32.gmra.mxu0 %v231
    %v321 = vpop.f32.mrf.mxu0
    %v322 = vadd.f32 %v253, %v321
    %v323 = vpop.f32.mrf.mxu0
    %324 = vdwg.mxu0
    %vm325 = vcmask 64512
    %326 = vst.msk [vmem:[#allocation7] sm:$0xff] %vm325, %v322
    // Predicated region
    $region38: #{new_basic_mlp.1} parent=1 // pred_check
      _
    $region39: #{new_basic_mlp.1} parent=1 // pred_check_branch
      %328 = sbr.rel (0) target = $region41
    $region40: #{new_basic_mlp.1} parent=1 // pred_region
      %s330 = ssub.s32 128, 128
      %331 = vsyncadd [#allocation4], %s330
      %s333 = sshll.u32 [#allocation7], 4
      %s334 = int_to_ptr.vmem [resolvable:$true] %s333
      %336 = dma.vmem_to_hbm [thread:$0]  %s334, 128, %s7, [#allocation4]
    $region41: #{new_basic_mlp.1} parent=1 // pred_fallthru
      _
    // Predicated region
    $region42: #{new_basic_mlp.1} parent=1 // pred_check
      _
    $region43: #{new_basic_mlp.1} parent=1 // pred_check_branch
      %338 = sbr.rel (0) target = $region45
    $region44: #{new_basic_mlp.1} parent=1 // pred_region
      %339 = dma.done [#allocation4], 128
    $region45: #{new_basic_mlp.1} parent=1 // pred_fallthru
      _
    %340 = vsyncpa [#allocation3], 1
    %341 = vsyncpa [#allocation6], 1
    %342 = vsyncpa [#allocation4], 1

</llo_original>
